<compile_context>
chip_gen: v5e
topology: v5e:2x2
jax: 0.10.0
libtpu: 0.0.40
codegen_flags: <defaults>
</compile_context>

<pallas_src>
import math

import jax
import jax.numpy as jnp
from jax.experimental import pallas as pl
from jax.experimental.pallas import tpu as pltpu

_LANES = 128  # vreg lane width; output is padded to this for unmasked stores


def _discriminator_kernel(x_ref, w1_ref, b1_ref, w2_ref, b2_ref,
                          w3_ref, b3_ref, o_ref):
    # x_ref: (TM, D_in) row tile; w*/b*: full (VMEM-resident) parameter tiles.
    x = x_ref[...]

    # Layer 1: (TM, D_in) @ (D_in, 64) + b1, ReLU.  f32 MXU accumulation.
    h = jnp.dot(x, w1_ref[...], preferred_element_type=jnp.float32)
    h = jnp.maximum(h + b1_ref[...], 0.0)

    # Layer 2: (TM, 64) @ (64, 32) + b2, ReLU.
    h = jnp.dot(h.astype(w2_ref.dtype), w2_ref[...],
                preferred_element_type=jnp.float32)
    h = jnp.maximum(h + b2_ref[...], 0.0)

    # Layer 3 (logits, N padded to 128 lanes): (TM, 32) @ (32, 128) + b3.
    out = jnp.dot(h.astype(w3_ref.dtype), w3_ref[...],
                  preferred_element_type=jnp.float32)
    out = out + b3_ref[...]

    # Lane-dense (TM, 128) store -> unmasked vst, dense HBM writeback.
    o_ref[...] = out.astype(o_ref.dtype)


def _round_up(x, m):
    return (x + m - 1) // m * m


def discriminator_forward(x, w1, b1, w2, b2, w3, b3, *, tm=2048):
    """Fused forward pass of Discriminator.

    x:  (M, D_in) with D_in = batch_size * 2
    w1: (D_in, 64), b1: (64,)
    w2: (64, 32),   b2: (32,)
    w3: (32, 2),    b3: (2,)
    Returns (M, 2) logits.

    ReverseLayerF is the identity in the forward pass, so no kernel work.
    """
    M, d_in = x.shape
    h1 = w1.shape[1]
    h2 = w2.shape[1]
    d_out = w3.shape[1]
    assert w1.shape == (d_in, h1)
    assert b1.shape == (h1,)
    assert w2.shape == (h1, h2)
    assert b2.shape == (h2,)
    assert w3.shape == (h2, d_out)
    assert b3.shape == (d_out,)
    assert d_out <= _LANES

    # Biases as (1, F) 2-D VMEM tiles; broadcast-added inside the kernel.
    b1 = b1.reshape(1, h1)
    b2 = b2.reshape(1, h2)

    # Lane-dense output: zero-pad the last layer's output features to 128.
    # Tiny one-time cost; removes masked partial stores of a 2-wide output.
    n_out = _LANES
    w3p = jnp.pad(w3, ((0, 0), (0, n_out - d_out)))
    b3p = jnp.pad(b3.reshape(1, d_out), ((0, 0), (0, n_out - d_out)))

    # Row-tile size: large (amortize per-grid-step overhead), multiple of 8
    # sublanes.  If a single tile would cover all rows, split in two so the
    # "parallel" axis can shard across v7x's two TensorCores.
    tile_m = min(tm, _round_up(M, 8))
    if tile_m >= M and M > 8:
        tile_m = _round_up(pl.cdiv(M, 2), 8)
    grid_m = pl.cdiv(M, tile_m)

    # No wrapper pad of x: Pallas handles the ragged last block.  Garbage tail
    # rows only produce garbage tail outputs, whose out-of-bounds stores are
    # discarded (the MLP is row-wise independent).
    out = pl.pallas_call(
        _discriminator_kernel,
        out_shape=jax.ShapeDtypeStruct((M, n_out), x.dtype),
        grid_spec=pltpu.PrefetchScalarGridSpec(
            num_scalar_prefetch=0,
            grid=(grid_m,),
            in_specs=[
                pl.BlockSpec((tile_m, d_in), lambda i: (i, 0)),
                # Parameters: constant block index -> stay VMEM-resident
                # across the row-tile grid (no per-step re-DMA).
                pl.BlockSpec((d_in, h1), lambda i: (0, 0)),
                pl.BlockSpec((1, h1), lambda i: (0, 0)),
                pl.BlockSpec((h1, h2), lambda i: (0, 0)),
                pl.BlockSpec((1, h2), lambda i: (0, 0)),
                pl.BlockSpec((h2, n_out), lambda i: (0, 0)),
                pl.BlockSpec((1, n_out), lambda i: (0, 0)),
            ],
            out_specs=pl.BlockSpec((tile_m, n_out), lambda i: (i, 0)),
        ),
        compiler_params=pltpu.CompilerParams(
            # Row tiles are independent -> shard across the 2 TCs on v7x.
            dimension_semantics=("parallel",),
        ),
    )(x, w1, b1, w2, b2, w3p, b3p)

    # Drop the lane-padding columns; only the first d_out are real logits.
    return out[:, :d_out]


if __name__ == "__main__":
    # Module init arg `batch_size` sets the input feature width (= 2*batch_size).
    batch_size = 8
    d_in = batch_size * 2      # 16
    M = 32                     # number of input rows

    key = jax.random.PRNGKey(0)
    ks = jax.random.split(key, 7)

    def _uniform(k, shape, fan_in):
        bound = 1.0 / math.sqrt(fan_in)
        return jax.random.uniform(k, shape, jnp.float32, -bound, bound)

    x = jax.random.normal(ks[0], (M, d_in), dtype=jnp.float32)

    # nn.Linear-style init (uniform(-1/sqrt(fan_in), 1/sqrt(fan_in))),
    # weights stored pre-transposed as (in_features, out_features).
    w1 = _uniform(ks[1], (d_in, 64), d_in)
    b1 = _uniform(ks[2], (64,), d_in)
    w2 = _uniform(ks[3], (64, 32), 64)
    b2 = _uniform(ks[4], (32,), 64)
    w3 = _uniform(ks[5], (32, 2), 32)
    b3 = _uniform(ks[6], (2,), 32)

    out = discriminator_forward(x, w1, b1, w2, b2, w3, b3)
    out = jax.block_until_ready(out)

    # Pure-JAX reference (same math as the PyTorch forward in eval mode).
    h = jnp.maximum(x @ w1 + b1, 0.0)
    h = jnp.maximum(h @ w2 + b2, 0.0)
    ref = h @ w3 + b3

    assert out.shape == (M, 2)
    assert jnp.allclose(out, ref, atol=1e-5, rtol=1e-5)

    print("KERNEL_OK")
</pallas_src>

<mosaic_0001>
module attributes {stable_mosaic.version = 11 : i64} {
  func.func @_discriminator_kernel(%arg0: i32, %arg1: memref<16x16xf32, #tpu.memory_space<vmem>>, %arg2: memref<16x64xf32, #tpu.memory_space<vmem>>, %arg3: memref<1x64xf32, #tpu.memory_space<vmem>>, %arg4: memref<64x32xf32, #tpu.memory_space<vmem>>, %arg5: memref<1x32xf32, #tpu.memory_space<vmem>>, %arg6: memref<32x128xf32, #tpu.memory_space<vmem>>, %arg7: memref<1x128xf32, #tpu.memory_space<vmem>>, %arg8: memref<16x128xf32, #tpu.memory_space<vmem>>) attributes {dimension_semantics = [#tpu.dimension_semantics<parallel>], iteration_bounds = array<i64: 2>, scalar_prefetch = 0 : i64, scratch_operands = 0 : i64, tpu.core_type = #tpu.core_type<tc>, window_params = [{transform_indices = @transform_0, window_bounds = array<i64: 16, 16>}, {pipeline_mode = #tpu.pipeline_mode<synchronous>, transform_indices = @transform_1, window_bounds = array<i64: 16, 64>}, {pipeline_mode = #tpu.pipeline_mode<synchronous>, transform_indices = @transform_2, window_bounds = array<i64: 1, 64>}, {pipeline_mode = #tpu.pipeline_mode<synchronous>, transform_indices = @transform_3, window_bounds = array<i64: 64, 32>}, {pipeline_mode = #tpu.pipeline_mode<synchronous>, transform_indices = @transform_4, window_bounds = array<i64: 1, 32>}, {pipeline_mode = #tpu.pipeline_mode<synchronous>, transform_indices = @transform_5, window_bounds = array<i64: 32, 128>}, {pipeline_mode = #tpu.pipeline_mode<synchronous>, transform_indices = @transform_6, window_bounds = array<i64: 1, 128>}, {transform_indices = @transform_7, window_bounds = array<i64: 16, 128>}]} {
    %c0 = arith.constant 0 : index
    %c0_0 = arith.constant 0 : index
    %0 = vector.load %arg1[%c0, %c0_0] : memref<16x16xf32, #tpu.memory_space<vmem>>, vector<16x16xf32>
    %c0_1 = arith.constant 0 : index
    %c0_2 = arith.constant 0 : index
    %1 = vector.load %arg2[%c0_1, %c0_2] : memref<16x64xf32, #tpu.memory_space<vmem>>, vector<16x64xf32>
    %cst = arith.constant dense<0.000000e+00> : vector<16x64xf32>
    %2 = tpu.matmul %0, %1, %cst {dimension_numbers = #tpu.dot_dimension_numbers<[1], [0], [0], [1], [0, 0, 1, 1], [], []>} : vector<16x16xf32>, vector<16x64xf32>, vector<16x64xf32> -> vector<16x64xf32>
    %c0_3 = arith.constant 0 : index
    %c0_4 = arith.constant 0 : index
    %3 = vector.load %arg3[%c0_3, %c0_4] : memref<1x64xf32, #tpu.memory_space<vmem>>, vector<1x64xf32>
    %4 = vector.broadcast %3 : vector<1x64xf32> to vector<16x64xf32>
    %5 = arith.addf %2, %4 : vector<16x64xf32>
    %cst_5 = arith.constant 0.000000e+00 : f32
    %6 = vector.broadcast %cst_5 : f32 to vector<16x64xf32>
    %7 = arith.maximumf %5, %6 : vector<16x64xf32>
    %c0_6 = arith.constant 0 : index
    %c0_7 = arith.constant 0 : index
    %8 = vector.load %arg4[%c0_6, %c0_7] : memref<64x32xf32, #tpu.memory_space<vmem>>, vector<64x32xf32>
    %cst_8 = arith.constant dense<0.000000e+00> : vector<16x32xf32>
    %9 = tpu.matmul %7, %8, %cst_8 {dimension_numbers = #tpu.dot_dimension_numbers<[1], [0], [0], [1], [0, 0, 1, 1], [], []>} : vector<16x64xf32>, vector<64x32xf32>, vector<16x32xf32> -> vector<16x32xf32>
    %c0_9 = arith.constant 0 : index
    %c0_10 = arith.constant 0 : index
    %10 = vector.load %arg5[%c0_9, %c0_10] : memref<1x32xf32, #tpu.memory_space<vmem>>, vector<1x32xf32>
    %11 = vector.broadcast %10 : vector<1x32xf32> to vector<16x32xf32>
    %12 = arith.addf %9, %11 : vector<16x32xf32>
    %cst_11 = arith.constant 0.000000e+00 : f32
    %13 = vector.broadcast %cst_11 : f32 to vector<16x32xf32>
    %14 = arith.maximumf %12, %13 : vector<16x32xf32>
    %c0_12 = arith.constant 0 : index
    %c0_13 = arith.constant 0 : index
    %15 = vector.load %arg6[%c0_12, %c0_13] : memref<32x128xf32, #tpu.memory_space<vmem>>, vector<32x128xf32>
    %cst_14 = arith.constant dense<0.000000e+00> : vector<16x128xf32>
    %16 = tpu.matmul %14, %15, %cst_14 {dimension_numbers = #tpu.dot_dimension_numbers<[1], [0], [0], [1], [0, 0, 1, 1], [], []>} : vector<16x32xf32>, vector<32x128xf32>, vector<16x128xf32> -> vector<16x128xf32>
    %c0_15 = arith.constant 0 : index
    %c0_16 = arith.constant 0 : index
    %17 = vector.load %arg7[%c0_15, %c0_16] : memref<1x128xf32, #tpu.memory_space<vmem>>, vector<1x128xf32>
    %18 = vector.broadcast %17 : vector<1x128xf32> to vector<16x128xf32>
    %19 = arith.addf %16, %18 : vector<16x128xf32>
    %c0_17 = arith.constant 0 : index
    %c0_18 = arith.constant 0 : index
    %20 = vector.load %arg8[%c0_17, %c0_18] : memref<16x128xf32, #tpu.memory_space<vmem>>, vector<16x128xf32>
    tpu.vector_store %arg8[%c0_17, %c0_18], %19 {strides = array<i32>} : memref<16x128xf32, #tpu.memory_space<vmem>>, vector<16x128xf32>,
    return
  }
  func.func @transform_0(%arg0: i32) -> (i32, i32) {
    %c0_i32 = arith.constant 0 : i32
    %c0_i32_0 = arith.constant 0 : i32
    return %arg0, %c0_i32 : i32, i32
  }
  func.func @transform_1(%arg0: i32) -> (i32, i32) {
    %c0_i32 = arith.constant 0 : i32
    %c0_i32_0 = arith.constant 0 : i32
    %c0_i32_1 = arith.constant 0 : i32
    return %c0_i32, %c0_i32_0 : i32, i32
  }
  func.func @transform_2(%arg0: i32) -> (i32, i32) {
    %c0_i32 = arith.constant 0 : i32
    %c0_i32_0 = arith.constant 0 : i32
    %c0_i32_1 = arith.constant 0 : i32
    return %c0_i32, %c0_i32_0 : i32, i32
  }
  func.func @transform_3(%arg0: i32) -> (i32, i32) {
    %c0_i32 = arith.constant 0 : i32
    %c0_i32_0 = arith.constant 0 : i32
    %c0_i32_1 = arith.constant 0 : i32
    return %c0_i32, %c0_i32_0 : i32, i32
  }
  func.func @transform_4(%arg0: i32) -> (i32, i32) {
    %c0_i32 = arith.constant 0 : i32
    %c0_i32_0 = arith.constant 0 : i32
    %c0_i32_1 = arith.constant 0 : i32
    return %c0_i32, %c0_i32_0 : i32, i32
  }
  func.func @transform_5(%arg0: i32) -> (i32, i32) {
    %c0_i32 = arith.constant 0 : i32
    %c0_i32_0 = arith.constant 0 : i32
    %c0_i32_1 = arith.constant 0 : i32
    return %c0_i32, %c0_i32_0 : i32, i32
  }
  func.func @transform_6(%arg0: i32) -> (i32, i32) {
    %c0_i32 = arith.constant 0 : i32
    %c0_i32_0 = arith.constant 0 : i32
    %c0_i32_1 = arith.constant 0 : i32
    return %c0_i32, %c0_i32_0 : i32, i32
  }
  func.func @transform_7(%arg0: i32) -> (i32, i32) {
    %c0_i32 = arith.constant 0 : i32
    %c0_i32_0 = arith.constant 0 : i32
    return %arg0, %c0_i32 : i32, i32
  }
}

</mosaic_0001>

<llo_original>
// kernel: tpu_custom_call.1
$region0: #{tpu_custom_call.1}
  #allocation0 [shape = 'u32[]', space=smem, size = 0x4, offset = 0x4, fixed_abs, tag = 'smem constant byte address 0x4 - core index']
  #allocation1 [shape = 'u32[72,128]{1,0:T(1,128)}', space=vmem, size = 0x9000, scoped, tag = 'internal scratch']
  %s0 = inlined_call_operand.vmem [shape: f32[32,16], index: 0, kind: input, shape index: {}]
  %s1 = inlined_call_operand.vmem [shape: f32[16,64], index: 1, kind: input, shape index: {}]
  %s2 = inlined_call_operand.vmem [shape: f32[1,64], index: 2, kind: input, shape index: {}]
  %s3 = inlined_call_operand.vmem [shape: f32[64,32], index: 3, kind: input, shape index: {}]
  %s4 = inlined_call_operand.vmem [shape: f32[1,32], index: 4, kind: input, shape index: {}]
  %s5 = inlined_call_operand.vmem [shape: f32[32,128], index: 5, kind: input, shape index: {}]
  %s6 = inlined_call_operand.vmem [shape: f32[1,128], index: 6, kind: input, shape index: {}]
  %s7 = inlined_call_operand.hbm [shape: f32[32,128], index: 7, kind: output, shape index: {}]
  %s8 = sld [smem:[#allocation0]]
  $region61: #{tpu_custom_call.1} parent=0
    _
  %s10 = ssub.s32 1, %s8
  %s11 = scalar_select 0, %s10, %s8
  $region1: #{tpu_custom_call.1} parent=0
    #allocation2 [shape = 'u8[16384]{0}', space=vmem, size = 0x4000, scoped, tag = 'output window, operand 0']
    #allocation3 [shape = 's32[2]{0}', space=sflag, size = 0x8, scoped, tag = 'scoped memory for tpu_custom_call.1']
    %12 = vsyncpa [#allocation3], 0
    %s13 = scalar_lea.sflag [#allocation3], 1
    %14 = vsyncpa %s13, 0
    loop: start=0, step=1, limit=4
    $region2: #{tpu_custom_call.1} parent=1 // loop_pre_header
      _
    $region3: #{tpu_custom_call.1} parent=1 // loop_header
      %s16 = sphi 0, %s20
      %p17 = scmp.ge.s32.totalorder %s16, 4
      %s26 = sphi 0, %s28
      %s29 = sphi 0, %s26
      %s30 = sphi 0, %s29
      %s46 = sphi 0, %s30
      %s50 = sphi 0, %s50
      %s52 = sphi 0, %s50
      %s53 = sphi 0, %s52
      %s67 = sphi 0, %s53
      %s71 = sphi 0, %s71
      %s73 = sphi 0, %s71
      %s74 = sphi 0, %s73
      %s88 = sphi 0, %s74
      %s92 = sphi 0, %s92
      %s94 = sphi 0, %s92
      %s95 = sphi 0, %s94
      %s109 = sphi 0, %s95
      %s113 = sphi 0, %s113
      %s115 = sphi 0, %s113
      %s116 = sphi 0, %s115
      %s130 = sphi 0, %s116
      %s134 = sphi 0, %s134
      %s136 = sphi 0, %s134
      %s137 = sphi 0, %s136
      %s151 = sphi 0, %s137
      %s155 = sphi 0, %s155
      %s157 = sphi 0, %s155
      %s158 = sphi 0, %s157
      %s172 = sphi 0, %s158
      %s178 = sphi 0, %s180
      %s181 = sphi 0, %s178
      %s182 = sphi 0, %s181
      %s198 = sphi 0, %s182
    $region4: #{tpu_custom_call.1} parent=1 // loop_header_branch
      %19 = sbr.rel (%p17) target = $region8
    $region5: #{tpu_custom_call.1} parent=1 // loop_body
      %s21 = ssub.s32 %s16, 1
      %s22 = ssub.s32 %s16, 2
      %s23 = sadd.s32 %s16, 1
      %s24 = ssub.s32 %s16, %s23
      %p25 = scmp.eq.s32.totalorder %s24, 0
      %s27 = sadd.s32 %s26, 1
      %s28 = scalar_select %p25, %s26, %s27
      %p31 = pneg %p25
      %p32 = scmp.eq.s32.totalorder %s16, 1
      %p33 = por %p31, %p32
      %p34 = scmp.ne.s32.totalorder %s26, %s29
      %p35 = scmp.eq.s32.totalorder %s16, 0
      %p36 = por %p34, %p35
      %p37 = scmp.ne.s32.totalorder %s26, %s29
      %p38 = scmp.eq.s32.totalorder %s21, 1
      %p39 = por %p37, %p38
      %p40 = scmp.ne.s32.totalorder %s29, %s30
      %p41 = scmp.eq.s32.totalorder %s21, 0
      %p42 = por %p40, %p41
      %p43 = scmp.ne.s32.totalorder %s29, %s30
      %p44 = scmp.eq.s32.totalorder %s22, 1
      %p45 = por %p43, %p44
      %p47 = scmp.ne.s32.totalorder %s30, %s46
      %p48 = scmp.eq.s32.totalorder %s22, 0
      %p49 = por %p47, %p48
      %s51 = sadd.s32 %s50, 1
      %p54 = scmp.eq.s32.totalorder %s16, 1
      %p55 = scmp.ne.s32.totalorder %s50, %s52
      %p56 = scmp.eq.s32.totalorder %s16, 0
      %p57 = por %p55, %p56
      %p58 = scmp.ne.s32.totalorder %s50, %s52
      %p59 = scmp.eq.s32.totalorder %s21, 1
      %p60 = por %p58, %p59
      %p61 = scmp.ne.s32.totalorder %s52, %s53
      %p62 = scmp.eq.s32.totalorder %s21, 0
      %p63 = por %p61, %p62
      %p64 = scmp.ne.s32.totalorder %s52, %s53
      %p65 = scmp.eq.s32.totalorder %s22, 1
      %p66 = por %p64, %p65
      %p68 = scmp.ne.s32.totalorder %s53, %s67
      %p69 = scmp.eq.s32.totalorder %s22, 0
      %p70 = por %p68, %p69
      %s72 = sadd.s32 %s71, 1
      %p75 = scmp.eq.s32.totalorder %s16, 1
      %p76 = scmp.ne.s32.totalorder %s71, %s73
      %p77 = scmp.eq.s32.totalorder %s16, 0
      %p78 = por %p76, %p77
      %p79 = scmp.ne.s32.totalorder %s71, %s73
      %p80 = scmp.eq.s32.totalorder %s21, 1
      %p81 = por %p79, %p80
      %p82 = scmp.ne.s32.totalorder %s73, %s74
      %p83 = scmp.eq.s32.totalorder %s21, 0
      %p84 = por %p82, %p83
      %p85 = scmp.ne.s32.totalorder %s73, %s74
      %p86 = scmp.eq.s32.totalorder %s22, 1
      %p87 = por %p85, %p86
      %p89 = scmp.ne.s32.totalorder %s74, %s88
      %p90 = scmp.eq.s32.totalorder %s22, 0
      %p91 = por %p89, %p90
      %s93 = sadd.s32 %s92, 1
      %p96 = scmp.eq.s32.totalorder %s16, 1
      %p97 = scmp.ne.s32.totalorder %s92, %s94
      %p98 = scmp.eq.s32.totalorder %s16, 0
      %p99 = por %p97, %p98
      %p100 = scmp.ne.s32.totalorder %s92, %s94
      %p101 = scmp.eq.s32.totalorder %s21, 1
      %p102 = por %p100, %p101
      %p103 = scmp.ne.s32.totalorder %s94, %s95
      %p104 = scmp.eq.s32.totalorder %s21, 0
      %p105 = por %p103, %p104
      %p106 = scmp.ne.s32.totalorder %s94, %s95
      %p107 = scmp.eq.s32.totalorder %s22, 1
      %p108 = por %p106, %p107
      %p110 = scmp.ne.s32.totalorder %s95, %s109
      %p111 = scmp.eq.s32.totalorder %s22, 0
      %p112 = por %p110, %p111
      %s114 = sadd.s32 %s113, 1
      %p117 = scmp.eq.s32.totalorder %s16, 1
      %p118 = scmp.ne.s32.totalorder %s113, %s115
      %p119 = scmp.eq.s32.totalorder %s16, 0
      %p120 = por %p118, %p119
      %p121 = scmp.ne.s32.totalorder %s113, %s115
      %p122 = scmp.eq.s32.totalorder %s21, 1
      %p123 = por %p121, %p122
      %p124 = scmp.ne.s32.totalorder %s115, %s116
      %p125 = scmp.eq.s32.totalorder %s21, 0
      %p126 = por %p124, %p125
      %p127 = scmp.ne.s32.totalorder %s115, %s116
      %p128 = scmp.eq.s32.totalorder %s22, 1
      %p129 = por %p127, %p128
      %p131 = scmp.ne.s32.totalorder %s116, %s130
      %p132 = scmp.eq.s32.totalorder %s22, 0
      %p133 = por %p131, %p132
      %s135 = sadd.s32 %s134, 1
      %p138 = scmp.eq.s32.totalorder %s16, 1
      %p139 = scmp.ne.s32.totalorder %s134, %s136
      %p140 = scmp.eq.s32.totalorder %s16, 0
      %p141 = por %p139, %p140
      %p142 = scmp.ne.s32.totalorder %s134, %s136
      %p143 = scmp.eq.s32.totalorder %s21, 1
      %p144 = por %p142, %p143
      %p145 = scmp.ne.s32.totalorder %s136, %s137
      %p146 = scmp.eq.s32.totalorder %s21, 0
      %p147 = por %p145, %p146
      %p148 = scmp.ne.s32.totalorder %s136, %s137
      %p149 = scmp.eq.s32.totalorder %s22, 1
      %p150 = por %p148, %p149
      %p152 = scmp.ne.s32.totalorder %s137, %s151
      %p153 = scmp.eq.s32.totalorder %s22, 0
      %p154 = por %p152, %p153
      %s156 = sadd.s32 %s155, 1
      %p159 = scmp.eq.s32.totalorder %s16, 1
      %p160 = scmp.ne.s32.totalorder %s155, %s157
      %p161 = scmp.eq.s32.totalorder %s16, 0
      %p162 = por %p160, %p161
      %p163 = scmp.ne.s32.totalorder %s155, %s157
      %p164 = scmp.eq.s32.totalorder %s21, 1
      %p165 = por %p163, %p164
      %p166 = scmp.ne.s32.totalorder %s157, %s158
      %p167 = scmp.eq.s32.totalorder %s21, 0
      %p168 = por %p166, %p167
      %p169 = scmp.ne.s32.totalorder %s157, %s158
      %p170 = scmp.eq.s32.totalorder %s22, 1
      %p171 = por %p169, %p170
      %p173 = scmp.ne.s32.totalorder %s158, %s172
      %p174 = scmp.eq.s32.totalorder %s22, 0
      %p175 = por %p173, %p174
      %s176 = ssub.s32 %s16, %s23
      %p177 = scmp.eq.s32.totalorder %s176, 0
      %s179 = sadd.s32 %s178, 1
      %s180 = scalar_select %p177, %s178, %s179
      %p183 = pneg %p177
      %p184 = scmp.eq.s32.totalorder %s16, 1
      %p185 = por %p183, %p184
      %p186 = scmp.ne.s32.totalorder %s178, %s181
      %p187 = scmp.eq.s32.totalorder %s16, 0
      %p188 = por %p186, %p187
      %p189 = scmp.ne.s32.totalorder %s178, %s181
      %p190 = scmp.eq.s32.totalorder %s21, 1
      %p191 = por %p189, %p190
      %p192 = scmp.ne.s32.totalorder %s181, %s182
      %p193 = scmp.eq.s32.totalorder %s21, 0
      %p194 = por %p192, %p193
      %p195 = scmp.ne.s32.totalorder %s181, %s182
      %p196 = scmp.eq.s32.totalorder %s22, 1
      %p197 = por %p195, %p196
      %p199 = scmp.ne.s32.totalorder %s182, %s198
      %p200 = scmp.eq.s32.totalorder %s22, 0
      %p201 = por %p199, %p200
      %p202 = scmp.le.s32.totalorder 1, %s16
      %p203 = scmp.lt.s32.totalorder %s16, 3
      %p204 = pnand %p202, %p203
      %p205 = pneg %p204
      // Predicated region
      $region9: #{tpu_custom_call.1} parent=5 // pred_check
        _
      $region10: #{tpu_custom_call.1} parent=5 // pred_check_branch
        %207 = sbr.rel (%p204) target = $region12
      $region11: #{tpu_custom_call.1} parent=5 // pred_region
        %s208 = ssub.s32 %s16, 1
        // Predicated region
        $region13: #{tpu_custom_call.1} parent=11 // pred_check
          %p209 = pneg %p63
        $region14: #{tpu_custom_call.1} parent=11 // pred_check_branch
          %211 = sbr.rel (%p209) target = $region16
        $region15: #{tpu_custom_call.1} parent=11 // pred_region
          _
        $region16: #{tpu_custom_call.1} parent=11 // pred_fallthru
          _
        // Predicated region
        $region17: #{tpu_custom_call.1} parent=11 // pred_check
          %p212 = pneg %p84
        $region18: #{tpu_custom_call.1} parent=11 // pred_check_branch
          %214 = sbr.rel (%p212) target = $region20
        $region19: #{tpu_custom_call.1} parent=11 // pred_region
          _
        $region20: #{tpu_custom_call.1} parent=11 // pred_fallthru
          _
        // Predicated region
        $region21: #{tpu_custom_call.1} parent=11 // pred_check
          %p215 = pneg %p105
        $region22: #{tpu_custom_call.1} parent=11 // pred_check_branch
          %217 = sbr.rel (%p215) target = $region24
        $region23: #{tpu_custom_call.1} parent=11 // pred_region
          _
        $region24: #{tpu_custom_call.1} parent=11 // pred_fallthru
          _
        // Predicated region
        $region25: #{tpu_custom_call.1} parent=11 // pred_check
          %p218 = pneg %p126
        $region26: #{tpu_custom_call.1} parent=11 // pred_check_branch
          %220 = sbr.rel (%p218) target = $region28
        $region27: #{tpu_custom_call.1} parent=11 // pred_region
          _
        $region28: #{tpu_custom_call.1} parent=11 // pred_fallthru
          _
        // Predicated region
        $region29: #{tpu_custom_call.1} parent=11 // pred_check
          %p221 = pneg %p147
        $region30: #{tpu_custom_call.1} parent=11 // pred_check_branch
          %223 = sbr.rel (%p221) target = $region32
        $region31: #{tpu_custom_call.1} parent=11 // pred_region
          _
        $region32: #{tpu_custom_call.1} parent=11 // pred_fallthru
          _
        // Predicated region
        $region33: #{tpu_custom_call.1} parent=11 // pred_check
          %p224 = pneg %p168
        $region34: #{tpu_custom_call.1} parent=11 // pred_check_branch
          %226 = sbr.rel (%p224) target = $region36
        $region35: #{tpu_custom_call.1} parent=11 // pred_region
          _
        $region36: #{tpu_custom_call.1} parent=11 // pred_fallthru
          _
      $region12: #{tpu_custom_call.1} parent=5 // pred_fallthru
        _
      %p227 = scmp.lt.s32.totalorder %s16, 2
      // Predicated region
      $region37: #{tpu_custom_call.1} parent=5 // pred_check
        %p228 = pneg %p227
      $region38: #{tpu_custom_call.1} parent=5 // pred_check_branch
        %230 = sbr.rel (%p228) target = $region40
      $region39: #{tpu_custom_call.1} parent=5 // pred_region
        // Predicated region
        $region41: #{tpu_custom_call.1} parent=39 // pred_check
          %p231 = pneg %p36
        $region42: #{tpu_custom_call.1} parent=39 // pred_check_branch
          %233 = sbr.rel (%p231) target = $region44
        $region43: #{tpu_custom_call.1} parent=39 // pred_region
          %s234 = smul.u32 2, %s16
          %p235 = scmp.lt.s32.totalorder %s234, 3
          %s236 = scalar_select %p235, %s234, 3
          %s237 = smul.addr %s236, 8
          %s238 = scalar_lea.vmem %s0, %s237
          %s239 = smul.u32 2, %s16
        $region44: #{tpu_custom_call.1} parent=39 // pred_fallthru
          _
      $region40: #{tpu_custom_call.1} parent=5 // pred_fallthru
        _
      %p240 = scmp.le.s32.totalorder 1, %s16
      %p241 = scmp.lt.s32.totalorder %s16, 3
      %p242 = pnand %p240, %p241
      %p243 = pneg %p242
      // Predicated region
      $region45: #{tpu_custom_call.1} parent=5 // pred_check
        _
      $region46: #{tpu_custom_call.1} parent=5 // pred_check_branch
        %245 = sbr.rel (%p242) target = $region48
      $region47: #{tpu_custom_call.1} parent=5 // pred_region
        %s246 = ssub.s32 %s16, 1
        %s247 = smul.u32 2, %s21
        %p248 = scmp.lt.s32.totalorder %s247, 3
        %s249 = scalar_select %p248, %s247, 3
        %s250 = smul.addr %s249, 8
        %s251 = scalar_lea.vmem %s0, %s250
        %p252 = pneg %p42
        %p253 = pneg %p39
        %p254 = pneg %p63
        %p255 = pneg %p60
        %p256 = pneg %p84
        %p257 = pneg %p81
        %p258 = pneg %p105
        %p259 = pneg %p102
        %p260 = pneg %p126
        %p261 = pneg %p123
        %p262 = pneg %p147
        %p263 = pneg %p144
        %p264 = pneg %p168
        %p265 = pneg %p165
        %p266 = pneg %p194
        %p267 = pneg %p191
        %s268 = sand.u32 %s181, 1
        %s269 = scalar_lea.sflag [#allocation3], %s268
        %s270 = sand.u32 %s181, 1
        %s271 = smul.addr %s270, 16
        %s272 = scalar_lea.vmem [#allocation2], %s271
        %s273 = smul.u32 2, %s21
        %p274 = scmp.lt.s32.totalorder %s273, 3
        %s275 = scalar_select %p274, %s273, 3
        %s276 = smul.addr %s275, 8
        %s277 = scalar_lea.vmem %s0, %s276
        %s278 = smul.u32 2, %s21
        %s279 = smul.u32 2, %s21
        %v280 = vld [vmem:[%s277] sm:$0xff]
        %v281 = vld [vmem:[%s277 + $0x8] sm:$0xff]
        %v282 = vld [vmem:[%s1] sm:$0xff]
        %v283 = vld [vmem:[%s1 + $0x8] sm:$0xff]
        %v284 = vld [vmem:[%s2] sm:$0x1]
        %v286 = vperm.slane %v284, 0
        %vm288 = vcmask 130048
        %v290 = vsel %vm288, %v280, 0
        %v293 = vsel %vm288, %v281, 0
        %295 = vmatpush.msra.mxu0 0.0
        %296 = vmatpush.msra.mxu0 0.0
        %297 = vmatpush.msra.mxu0 0.0
        %298 = vmatpush.msra.mxu0 0.0
        %299 = vmatpush.msra.mxu0 0.0
        %300 = vmatpush.msra.mxu0 0.0
        %301 = vmatpush.msra.mxu0 0.0
        %302 = vmatpush.msra.mxu0 0.0
        %303 = vmatpush.msra.mxu0 0.0
        %304 = vmatpush.msra.mxu0 0.0
        %305 = vmatpush.msra.mxu0 0.0
        %306 = vmatpush.msra.mxu0 0.0
        %307 = vmatpush.msra.mxu0 0.0
        %308 = vmatpush.msra.mxu0 0.0
        %309 = vmatpush.msra.mxu0 %v283
        %310 = vmatpush.msra.mxu0 %v282
        %311 = vmatmul.f32.gmra.mxu0 %v290
        %v312 = vpop.f32.mrf.mxu0
        %v313 = vadd.f32 %v286, %v312
        %314 = vmatmul.f32.gmra.mxu0 %v293
        %v315 = vpop.f32.mrf.mxu0
        %v316 = vadd.f32 %v286, %v315
        %317 = vdwg.mxu0
        %v318 = vmax.f32 %v313, 0.0
        %v319 = vmax.f32 %v316, 0.0
        %v320 = vld [vmem:[%s3] sm:$0xff]
        %v321 = vld [vmem:[%s3 + $0x8] sm:$0xff]
        %v322 = vld [vmem:[%s3 + $0x10] sm:$0xff]
        %v323 = vld [vmem:[%s3 + $0x18] sm:$0xff]
        %v324 = vld [vmem:[%s3 + $0x20] sm:$0xff]
        %v325 = vld [vmem:[%s3 + $0x28] sm:$0xff]
        %v326 = vld [vmem:[%s3 + $0x30] sm:$0xff]
        %v327 = vld [vmem:[%s3 + $0x38] sm:$0xff]
        %v328 = vld [vmem:[%s4] sm:$0x1]
        %v330 = vperm.slane %v328, 0
        %vm332 = vcmask 523264
        %v334 = vsel %vm332, %v318, 0
        %v337 = vsel %vm332, %v319, 0
        %339 = vmatpush.msra.mxu0 0.0
        %340 = vmatpush.msra.mxu0 0.0
        %341 = vmatpush.msra.mxu0 0.0
        %342 = vmatpush.msra.mxu0 0.0
        %343 = vmatpush.msra.mxu0 0.0
        %344 = vmatpush.msra.mxu0 0.0
        %345 = vmatpush.msra.mxu0 0.0
        %346 = vmatpush.msra.mxu0 0.0
        %347 = vmatpush.msra.mxu0 %v327
        %348 = vmatpush.msra.mxu0 %v326
        %349 = vmatpush.msra.mxu0 %v325
        %350 = vmatpush.msra.mxu0 %v324
        %351 = vmatpush.msra.mxu0 %v323
        %352 = vmatpush.msra.mxu0 %v322
        %353 = vmatpush.msra.mxu0 %v321
        %354 = vmatpush.msra.mxu0 %v320
        %355 = vmatmul.f32.gmra.mxu0 %v334
        %v356 = vpop.f32.mrf.mxu0
        %v357 = vadd.f32 %v330, %v356
        %358 = vmatmul.f32.gmra.mxu0 %v337
        %v359 = vpop.f32.mrf.mxu0
        %v360 = vadd.f32 %v330, %v359
        %361 = vdwg.mxu0
        %v362 = vmax.f32 %v357, 0.0
        %v363 = vmax.f32 %v360, 0.0
        %v364 = vld [vmem:[%s5] sm:$0xff]
        %v365 = vld [vmem:[%s5 + $0x8] sm:$0xff]
        %v366 = vld [vmem:[%s5 + $0x10] sm:$0xff]
        %v367 = vld [vmem:[%s5 + $0x18] sm:$0xff]
        %v368 = vld [vmem:[%s6] sm:$0x1]
        %v370 = vperm.slane %v368, 0
        %vm372 = vcmask 261120
        %v374 = vsel %vm372, %v362, 0
        %v377 = vsel %vm372, %v363, 0
        %379 = vmatpush.msra.mxu0 0.0
        %380 = vmatpush.msra.mxu0 0.0
        %381 = vmatpush.msra.mxu0 0.0
        %382 = vmatpush.msra.mxu0 0.0
        %383 = vmatpush.msra.mxu0 0.0
        %384 = vmatpush.msra.mxu0 0.0
        %385 = vmatpush.msra.mxu0 0.0
        %386 = vmatpush.msra.mxu0 0.0
        %387 = vmatpush.msra.mxu0 0.0
        %388 = vmatpush.msra.mxu0 0.0
        %389 = vmatpush.msra.mxu0 0.0
        %390 = vmatpush.msra.mxu0 0.0
        %391 = vmatpush.msra.mxu0 %v367
        %392 = vmatpush.msra.mxu0 %v366
        %393 = vmatpush.msra.mxu0 %v365
        %394 = vmatpush.msra.mxu0 %v364
        %395 = vmatmul.f32.gmra.mxu0 %v374
        %v396 = vpop.f32.mrf.mxu0
        %v397 = vadd.f32 %v370, %v396
        %398 = vmatmul.f32.gmra.mxu0 %v377
        %v399 = vpop.f32.mrf.mxu0
        %v400 = vadd.f32 %v370, %v399
        %401 = vdwg.mxu0
        %402 = vst [vmem:[%s272] sm:$0xff] %v397
        %403 = vst [vmem:[%s272 + $0x8] sm:$0xff] %v400
        %s404 = sand.u32 %s181, 1
        %s405 = scalar_lea.sflag [#allocation3], %s404
        %s406 = sand.u32 %s181, 1
        %s407 = smul.addr %s406, 16
        %s408 = scalar_lea.vmem [#allocation2], %s407
        // Predicated region
        $region49: #{tpu_custom_call.1} parent=47 // pred_check
          %p409 = pneg %p191
        $region50: #{tpu_custom_call.1} parent=47 // pred_check_branch
          %411 = sbr.rel (%p409) target = $region52
        $region51: #{tpu_custom_call.1} parent=47 // pred_region
          %s412 = smul.u32 2, %s21
          %414 = vsyncadd %s405, 0
          %s415 = smul.addr %s412, 8
          %s416 = scalar_lea.hbm %s7, %s415
          %s417 = sshll.u32 %s408, 4
          %s418 = int_to_ptr.vmem [resolvable:$true] %s417
          %s419 = sshll.u32 %s416, 4
          %s420 = int_to_ptr.hbm [resolvable:$true] %s419
          %425 = dma.vmem_to_hbm [thread:$0]  %s418, 256, %s420, %s405, 128, 128, 8
        $region52: #{tpu_custom_call.1} parent=47 // pred_fallthru
          _
      $region48: #{tpu_custom_call.1} parent=5 // pred_fallthru
        _
      %p426 = scmp.le.s32.totalorder 2, %s16
      // Predicated region
      $region53: #{tpu_custom_call.1} parent=5 // pred_check
        %p427 = pneg %p426
      $region54: #{tpu_custom_call.1} parent=5 // pred_check_branch
        %429 = sbr.rel (%p427) target = $region56
      $region55: #{tpu_custom_call.1} parent=5 // pred_region
        %s430 = ssub.s32 %s16, 2
        // Predicated region
        $region57: #{tpu_custom_call.1} parent=55 // pred_check
          %p431 = pneg %p197
        $region58: #{tpu_custom_call.1} parent=55 // pred_check_branch
          %433 = sbr.rel (%p431) target = $region60
        $region59: #{tpu_custom_call.1} parent=55 // pred_region
          %s434 = sand.u32 %s182, 1
          %s435 = scalar_lea.sflag [#allocation3], %s434
          %s436 = sand.u32 %s182, 1
          %s437 = smul.addr %s436, 16
          %s438 = scalar_lea.vmem [#allocation2], %s437
          %440 = dma.done %s435, 256
        $region60: #{tpu_custom_call.1} parent=55 // pred_fallthru
          _
      $region56: #{tpu_custom_call.1} parent=5 // pred_fallthru
        _
    $region6: #{tpu_custom_call.1} parent=1 // loop_footer
      %s20 = sadd.s32 1, %s16
    $region7: #{tpu_custom_call.1} parent=1 // loop_footer_branch
      %15 = sbr.rel target = $region3
    $region8: #{tpu_custom_call.1} parent=1 // loop_exit
      _
    %441 = vsyncpa [#allocation3], 1
    %s442 = scalar_lea.sflag [#allocation3], 1
    %443 = vsyncpa %s442, 1

</llo_original>
